<compile_context>
chip_gen: v7x
topology: tpu7x:2x2x1
jax: 0.10.0
libtpu: 0.0.40
codegen_flags: <defaults>
</compile_context>

<pallas_src>
import math

import jax
import jax.numpy as jnp
from jax import lax
from jax.experimental import pallas as pl
from jax.experimental.pallas import tpu as pltpu


def _round_up(x: int, m: int) -> int:
    return ((x + m - 1) // m) * m


def _tied_embedding_kernel(x_ref, w_ref, o_ref):
    # x_ref: (tm, E)   w_ref: (tn, E)   o_ref: (tm, tn)
    # NT-form contraction on E (RHS contracts its last / lane dim), so the MXU
    # is fed without transposing the weight tile in VMEM.
    # TODO(synk): if pl.lower_as_mlir ever shows an inserted relayout/vxpose of
    # the (tn, E) weight tile (more likely on v5e), pre-transpose the weight to
    # (E, vocab) once at parameter-load time and use the plain (K, N) form.
    o_ref[...] = lax.dot_general(
        x_ref[...],
        w_ref[...],
        dimension_numbers=(((1,), (1,)), ((), ())),
        preferred_element_type=jnp.float32,
    ).astype(o_ref.dtype)


def _vmem_budgets():
    """Generation-dependent VMEM budgets (v5e/v6e: 128 MiB, v7x: 64 MiB)."""
    try:
        cap = int(pltpu.get_tpu_info().vmem_capacity_bytes)
    except Exception:
        cap = 64 << 20                      # conservative fallback (v7x-sized)
    limit = min(int(cap * 0.75), 100 << 20)  # scoped-VMEM limit we request
    budget = int(limit * 0.85)               # tile double-buffer budget
    return budget, limit


def tied_embedding(
    x,
    weight,
    *,
    tm: int = 512,
    tn: int = 2048,
    out_dtype=None,
    tile_vmem_budget_bytes: int = None,
    vmem_limit_bytes: int = None,
):
    """Tied-embedding logits projection: out = x @ weight.T (Pallas TPU)."""
    *lead, embed = x.shape
    vocab, embed_w = weight.shape
    assert embed == embed_w, "embed_size mismatch"

    if out_dtype is None:
        out_dtype = x.dtype

    # Stream the weight in its storage dtype (store the tied embedding in bf16
    # to halve the dominant HBM stream).  Only the small activation is cast.
    if x.dtype != weight.dtype:
        x = x.astype(weight.dtype)
    # TODO(synk): on v7x, fp8 weight streaming (per-row scales folded into the
    # f32 accumulator) would halve the weight HBM traffic again vs bf16.

    m = math.prod(lead)
    x_flat = x.reshape(m, embed)

    in_itemsize = jnp.dtype(weight.dtype).itemsize
    out_itemsize = jnp.dtype(out_dtype).itemsize
    # Sublane multiple for the streamed dtype (f32 -> 8, bf16 -> 16, 8-bit -> 32).
    sub = max(8, 32 // in_itemsize)

    if tile_vmem_budget_bytes is None or vmem_limit_bytes is None:
        budget, limit = _vmem_budgets()
        tile_vmem_budget_bytes = tile_vmem_budget_bytes or budget
        vmem_limit_bytes = vmem_limit_bytes or limit

    # ---- tile selection ------------------------------------------------------
    tm = _round_up(min(tm, _round_up(m, sub)), sub)
    tn = _round_up(min(tn, _round_up(vocab, 128)), 128)

    def _tile_vmem(tm_, tn_):
        # 2x double-buffers for the x tile + weight tile, 2x for the output tile.
        return (2 * (tm_ + tn_) * embed * in_itemsize
                + 2 * tm_ * tn_ * out_itemsize)

    def _fits():
        return _tile_vmem(tm, tn) <= tile_vmem_budget_bytes

    # Keep the restream-amortizing vocab tile (tn) as large as possible:
    # shrink the M tile first, only then the vocab tile.
    tm_floor1 = max(sub, 256)
    while not _fits() and tm > tm_floor1:
        tm = max(tm_floor1, (tm // 2) // sub * sub)
    while not _fits() and tn > 512:
        tn = max(512, (tn // 2) // 128 * 128)
    while not _fits() and tm > sub:
        tm = max(sub, (tm // 2) // sub * sub)
    while not _fits() and tn > 128:
        tn = max(128, (tn // 2) // 128 * 128)

    n_vocab_tiles = pl.cdiv(vocab, tn)
    n_m_tiles = pl.cdiv(m, tm)
    # Vocab OUTER (weight tile resident, megacore-sharded), M INNER (x restreamed).
    grid = (n_vocab_tiles, n_m_tiles)

    cost = pl.CostEstimate(
        flops=2 * m * vocab * embed,
        transcendentals=0,
        bytes_accessed=(
            vocab * embed * in_itemsize                 # weight: streamed once
            + n_vocab_tiles * m * embed * in_itemsize   # x: restreamed per vocab tile
            + m * vocab * out_itemsize                  # logits writeback
        ),
    )

    out_flat = pl.pallas_call(
        _tied_embedding_kernel,
        out_shape=jax.ShapeDtypeStruct((m, vocab), out_dtype),
        grid_spec=pltpu.PrefetchScalarGridSpec(
            num_scalar_prefetch=0,
            grid=grid,
            in_specs=[
                # activations: indexed by the inner M axis (restreamed, small)
                pl.BlockSpec((tm, embed), lambda j, i: (i, 0)),
                # weight: indexed by the outer vocab axis only -> fetched once
                # per outer step and resident for the whole inner M sweep
                pl.BlockSpec((tn, embed), lambda j, i: (j, 0)),
            ],
            out_specs=pl.BlockSpec((tm, tn), lambda j, i: (i, j)),
        ),
        compiler_params=pltpu.CompilerParams(
            # Both axes independent; leading (vocab) axis has many tiles, so
            # v7x megacore shards usefully even at decode-sized M.
            dimension_semantics=("parallel", "parallel"),
            vmem_limit_bytes=vmem_limit_bytes,
        ),
        cost_estimate=cost,
    )(x_flat, weight)

    return out_flat.reshape(*lead, vocab)


if __name__ == "__main__":
    # Small, decoder-like shapes; vocab deliberately NOT a multiple of 128 and
    # M not a multiple of the tile, to exercise the ragged edge-block masking.
    batch, seq, embed, vocab = 2, 8, 32, 250

    key = jax.random.PRNGKey(0)
    kx, kw = jax.random.split(key)
    # Deterministic "tied" embedding weight (as nn.Embedding would hold it).
    weight = jax.random.normal(kw, (vocab, embed), dtype=jnp.float32) * 0.02
    x = jax.random.normal(kx, (batch, seq, embed), dtype=jnp.float32)

    ref = jnp.matmul(x, weight.T)

    # f32 weight path.
    out = jax.block_until_ready(tied_embedding(x, weight))
    assert out.shape == (batch, seq, vocab)
    assert jnp.allclose(out, ref, atol=1e-5, rtol=1e-5)

    # bf16-stored weight path (halves the dominant weight HBM stream; the MXU
    # still accumulates in f32).  The one-time cast here stands in for storing
    # the tied embedding in bf16 — it is not a per-call conversion in the kernel.
    weight_bf16 = weight.astype(jnp.bfloat16)
    out_bf16 = jax.block_until_ready(
        tied_embedding(x, weight_bf16, out_dtype=jnp.float32))
    assert out_bf16.shape == (batch, seq, vocab)
    assert jnp.allclose(out_bf16, ref, atol=1e-2, rtol=1e-2)

    # Decoder.decode(): next-token distribution = last position's logits.
    nxt = out[:, -1]
    assert nxt.shape == (batch, vocab)

    print("KERNEL_OK")
</pallas_src>

<mosaic_0001>
module attributes {stable_mosaic.version = 11 : i64} {
  func.func @_tied_embedding_kernel(%arg0: i32, %arg1: i32, %arg2: memref<16x32xf32, #tpu.memory_space<vmem>>, %arg3: memref<256x32xf32, #tpu.memory_space<vmem>>, %arg4: memref<16x256xf32, #tpu.memory_space<vmem>>) attributes {dimension_semantics = [#tpu.dimension_semantics<parallel>, #tpu.dimension_semantics<parallel>], iteration_bounds = array<i64: 1, 1>, scalar_prefetch = 0 : i64, scratch_operands = 0 : i64, tpu.core_type = #tpu.core_type<tc>, window_params = [{transform_indices = @transform_0, window_bounds = array<i64: 16, 32>}, {transform_indices = @transform_1, window_bounds = array<i64: 256, 32>}, {transform_indices = @transform_2, window_bounds = array<i64: 16, 256>}]} {
    %c0 = arith.constant 0 : index
    %c0_0 = arith.constant 0 : index
    %0 = vector.load %arg2[%c0, %c0_0] : memref<16x32xf32, #tpu.memory_space<vmem>>, vector<16x32xf32>
    %c0_1 = arith.constant 0 : index
    %c0_2 = arith.constant 0 : index
    %1 = vector.load %arg3[%c0_1, %c0_2] : memref<256x32xf32, #tpu.memory_space<vmem>>, vector<256x32xf32>
    %cst = arith.constant dense<0.000000e+00> : vector<16x256xf32>
    %2 = tpu.matmul %0, %1, %cst {dimension_numbers = #tpu.dot_dimension_numbers<[1], [1], [0], [0], [0, 0, 1, 0], [], []>} : vector<16x32xf32>, vector<256x32xf32>, vector<16x256xf32> -> vector<16x256xf32>
    %c0_3 = arith.constant 0 : index
    %c0_4 = arith.constant 0 : index
    %3 = vector.load %arg4[%c0_3, %c0_4] : memref<16x256xf32, #tpu.memory_space<vmem>>, vector<16x256xf32>
    tpu.vector_store %arg4[%c0_3, %c0_4], %2 {strides = array<i32>} : memref<16x256xf32, #tpu.memory_space<vmem>>, vector<16x256xf32>,
    return
  }
  func.func @transform_0(%arg0: i32, %arg1: i32) -> (i32, i32) {
    %c0_i32 = arith.constant 0 : i32
    %c0_i32_0 = arith.constant 0 : i32
    return %arg1, %c0_i32 : i32, i32
  }
  func.func @transform_1(%arg0: i32, %arg1: i32) -> (i32, i32) {
    %c0_i32 = arith.constant 0 : i32
    %c0_i32_0 = arith.constant 0 : i32
    return %arg0, %c0_i32 : i32, i32
  }
  func.func @transform_2(%arg0: i32, %arg1: i32) -> (i32, i32) {
    %c0_i32 = arith.constant 0 : i32
    return %arg1, %arg0 : i32, i32
  }
}

</mosaic_0001>

<llo_original>
// kernel: tpu_custom_call.1
$region0: #{tpu_custom_call.1}
  #allocation0 [shape = 'u32[]', space=smem, size = 0x4, offset = 0x4, fixed_abs, tag = 'smem constant byte address 0x4 - core index']
  #allocation1 [shape = 'u32[144,128]{1,0:T(1,128)}', space=vmem, size = 0x12000, scoped, tag = 'internal scratch']
  %s0 = inlined_call_operand.vmem [shape: f32[16,32], index: 0, kind: input, shape index: {}]
  %s1 = inlined_call_operand.vmem [shape: f32[250,32], index: 1, kind: input, shape index: {}]
  %s2 = inlined_call_operand.hbm [shape: f32[16,250], index: 2, kind: output, shape index: {}]
  %s3 = sld [smem:[#allocation0]]
  $region18: #{tpu_custom_call.1} parent=0
    _
  %s5 = ssub.s32 1, %s3
  %s6 = scalar_select 0, %s5, %s3
  $region1: #{tpu_custom_call.1} parent=0
    #allocation2 [shape = 'u8[16384]{0}', space=vmem, size = 0x4000, scoped, tag = 'output window, operand 0, single buffered']
    #allocation3 [shape = 's32[1]{0}', space=sflag, size = 0x4, scoped, tag = 'scoped memory for tpu_custom_call.1']
    %7 = vsyncpa [#allocation3], 0
    // Predicated region
    $region2: #{tpu_custom_call.1} parent=1 // pred_check
      _
    $region3: #{tpu_custom_call.1} parent=1 // pred_check_branch
      %9 = sbr.rel (0) target = $region5
    $region4: #{tpu_custom_call.1} parent=1 // pred_region
      _
    $region5: #{tpu_custom_call.1} parent=1 // pred_fallthru
      _
    // Predicated region
    $region6: #{tpu_custom_call.1} parent=1 // pred_check
      _
    $region7: #{tpu_custom_call.1} parent=1 // pred_check_branch
      %11 = sbr.rel (0) target = $region9
    $region8: #{tpu_custom_call.1} parent=1 // pred_region
      _
    $region9: #{tpu_custom_call.1} parent=1 // pred_fallthru
      _
    %v12 = vld [vmem:[%s0] sm:$0xff]
    %v13 = vld [vmem:[%s0 + $0x8] sm:$0xff]
    %v14 = vld [vmem:[%s1] sm:$0xff]
    %v15 = vld [vmem:[%s1 + $0x8] sm:$0xff]
    %v16 = vld [vmem:[%s1 + $0x10] sm:$0xff]
    %v17 = vld [vmem:[%s1 + $0x18] sm:$0xff]
    %v18 = vld [vmem:[%s1 + $0x20] sm:$0xff]
    %v19 = vld [vmem:[%s1 + $0x28] sm:$0xff]
    %v20 = vld [vmem:[%s1 + $0x30] sm:$0xff]
    %v21 = vld [vmem:[%s1 + $0x38] sm:$0xff]
    %v22 = vld [vmem:[%s1 + $0x40] sm:$0xff]
    %v23 = vld [vmem:[%s1 + $0x48] sm:$0xff]
    %v24 = vld [vmem:[%s1 + $0x50] sm:$0xff]
    %v25 = vld [vmem:[%s1 + $0x58] sm:$0xff]
    %v26 = vld [vmem:[%s1 + $0x60] sm:$0xff]
    %v27 = vld [vmem:[%s1 + $0x68] sm:$0xff]
    %v28 = vld [vmem:[%s1 + $0x70] sm:$0xff]
    %v29 = vld [vmem:[%s1 + $0x78] sm:$0xff]
    %v30 = vld [vmem:[%s1 + $0x80] sm:$0xff]
    %v31 = vld [vmem:[%s1 + $0x88] sm:$0xff]
    %v32 = vld [vmem:[%s1 + $0x90] sm:$0xff]
    %v33 = vld [vmem:[%s1 + $0x98] sm:$0xff]
    %v34 = vld [vmem:[%s1 + $0xa0] sm:$0xff]
    %v35 = vld [vmem:[%s1 + $0xa8] sm:$0xff]
    %v36 = vld [vmem:[%s1 + $0xb0] sm:$0xff]
    %v37 = vld [vmem:[%s1 + $0xb8] sm:$0xff]
    %v38 = vld [vmem:[%s1 + $0xc0] sm:$0xff]
    %v39 = vld [vmem:[%s1 + $0xc8] sm:$0xff]
    %v40 = vld [vmem:[%s1 + $0xd0] sm:$0xff]
    %v41 = vld [vmem:[%s1 + $0xd8] sm:$0xff]
    %v42 = vld [vmem:[%s1 + $0xe0] sm:$0xff]
    %v43 = vld [vmem:[%s1 + $0xe8] sm:$0xff]
    %v44 = vld [vmem:[%s1 + $0xf0] sm:$0xff]
    %v45 = vld [vmem:[%s1 + $0xf8] sm:$0xff]
    %vm46 = vcmask 261120
    %v48 = vsel %vm46, %v12, 0
    %v51 = vsel %vm46, %v13, 0
    %v54 = vsel %vm46, %v14, 0
    %v57 = vsel %vm46, %v15, 0
    %v60 = vsel %vm46, %v16, 0
    %v63 = vsel %vm46, %v17, 0
    %v66 = vsel %vm46, %v18, 0
    %v69 = vsel %vm46, %v19, 0
    %v72 = vsel %vm46, %v20, 0
    %v75 = vsel %vm46, %v21, 0
    %v78 = vsel %vm46, %v22, 0
    %v81 = vsel %vm46, %v23, 0
    %v84 = vsel %vm46, %v24, 0
    %v87 = vsel %vm46, %v25, 0
    %v90 = vsel %vm46, %v26, 0
    %v93 = vsel %vm46, %v27, 0
    %v96 = vsel %vm46, %v28, 0
    %v99 = vsel %vm46, %v29, 0
    %v102 = vsel %vm46, %v30, 0
    %v105 = vsel %vm46, %v31, 0
    %v108 = vsel %vm46, %v32, 0
    %v111 = vsel %vm46, %v33, 0
    %v114 = vsel %vm46, %v34, 0
    %v117 = vsel %vm46, %v35, 0
    %v120 = vsel %vm46, %v36, 0
    %v123 = vsel %vm46, %v37, 0
    %v126 = vsel %vm46, %v38, 0
    %v129 = vsel %vm46, %v39, 0
    %v132 = vsel %vm46, %v40, 0
    %v135 = vsel %vm46, %v41, 0
    %v138 = vsel %vm46, %v42, 0
    %v141 = vsel %vm46, %v43, 0
    %v144 = vsel %vm46, %v44, 0
    %v147 = vsel %vm46, %v45, 0
    %149 = vmatprep.subr.mxu0 0.0
    %150 = vmatpush1.xpose.msra.mxu0 %v54
    %151 = vmatprep.subr.mxu0 0.0
    %152 = vmatpush1.xpose.msra.mxu0 %v57
    %153 = vmatprep.subr.mxu0 0.0
    %154 = vmatpush1.xpose.msra.mxu0 %v60
    %155 = vmatprep.subr.mxu0 0.0
    %156 = vmatpush1.xpose.msra.mxu0 %v63
    %157 = vmatprep.subr.mxu0 0.0
    %158 = vmatpush1.xpose.msra.mxu0 %v66
    %159 = vmatprep.subr.mxu0 0.0
    %160 = vmatpush1.xpose.msra.mxu0 %v69
    %161 = vmatprep.subr.mxu0 0.0
    %162 = vmatpush1.xpose.msra.mxu0 %v72
    %163 = vmatprep.subr.mxu0 0.0
    %164 = vmatpush1.xpose.msra.mxu0 %v75
    %165 = vmatprep.subr.mxu0 0.0
    %166 = vmatpush1.xpose.msra.mxu0 %v78
    %167 = vmatprep.subr.mxu0 0.0
    %168 = vmatpush1.xpose.msra.mxu0 %v81
    %169 = vmatprep.subr.mxu0 0.0
    %170 = vmatpush1.xpose.msra.mxu0 %v84
    %171 = vmatprep.subr.mxu0 0.0
    %172 = vmatpush1.xpose.msra.mxu0 %v87
    %173 = vmatprep.subr.mxu0 0.0
    %174 = vmatpush1.xpose.msra.mxu0 %v90
    %175 = vmatprep.subr.mxu0 0.0
    %176 = vmatpush1.xpose.msra.mxu0 %v93
    %177 = vmatprep.subr.mxu0 0.0
    %178 = vmatpush1.xpose.msra.mxu0 %v96
    %179 = vmatprep.subr.mxu0 0.0
    %180 = vmatpush1.xpose.msra.mxu0 %v99
    %181 = vmatprep.subr.mxu0 0.0
    %182 = vmatpush1.xpose.msra.mxu0 %v102
    %183 = vmatprep.subr.mxu0 0.0
    %184 = vmatpush1.xpose.msra.mxu0 %v105
    %185 = vmatprep.subr.mxu0 0.0
    %186 = vmatpush1.xpose.msra.mxu0 %v108
    %187 = vmatprep.subr.mxu0 0.0
    %188 = vmatpush1.xpose.msra.mxu0 %v111
    %189 = vmatprep.subr.mxu0 0.0
    %190 = vmatpush1.xpose.msra.mxu0 %v114
    %191 = vmatprep.subr.mxu0 0.0
    %192 = vmatpush1.xpose.msra.mxu0 %v117
    %193 = vmatprep.subr.mxu0 0.0
    %194 = vmatpush1.xpose.msra.mxu0 %v120
    %195 = vmatprep.subr.mxu0 0.0
    %196 = vmatpush1.xpose.msra.mxu0 %v123
    %197 = vmatprep.subr.mxu0 0.0
    %198 = vmatpush1.xpose.msra.mxu0 %v126
    %199 = vmatprep.subr.mxu0 0.0
    %200 = vmatpush1.xpose.msra.mxu0 %v129
    %201 = vmatprep.subr.mxu0 0.0
    %202 = vmatpush1.xpose.msra.mxu0 %v132
    %203 = vmatprep.subr.mxu0 0.0
    %204 = vmatpush1.xpose.msra.mxu0 %v135
    %205 = vmatprep.subr.mxu0 0.0
    %206 = vmatpush1.xpose.msra.mxu0 %v138
    %207 = vmatprep.subr.mxu0 0.0
    %208 = vmatpush1.xpose.msra.mxu0 %v141
    %209 = vmatprep.subr.mxu0 0.0
    %210 = vmatpush1.xpose.msra.mxu0 %v144
    %211 = vmatprep.subr.mxu0 0.0
    %212 = vmatpush1.xpose.msra.mxu0 %v147
    %213 = vmatprep.mubr.f32.mxu0 0.0
    %214 = vmatmul.mubr.f32.gmra.mrb[0].mxu0 %v48
    %v215 = vpop.f32.mrb[0].mxu0
    %v216 = vadd.f32 0.0, %v215
    %v217 = vpop.f32.mrb[0].mxu0
    %v218 = vadd.f32 0.0, %v217
    %219 = vmatprep.mubr.f32.mxu0 0.0
    %220 = vmatmul.mubr.f32.gmra.mrb[0].mxu0 %v51
    %v221 = vpop.f32.mrb[0].mxu0
    %v222 = vadd.f32 0.0, %v221
    %v223 = vpop.f32.mrb[0].mxu0
    %v224 = vadd.f32 0.0, %v223
    %225 = vdwg.mxu0
    %226 = vst [vmem:[#allocation2] sm:$0xff] %v216
    %227 = vst [vmem:[#allocation2 + $0x8] sm:$0xff] %v218
    %228 = vst [vmem:[#allocation2 + $0x10] sm:$0xff] %v222
    %229 = vst [vmem:[#allocation2 + $0x18] sm:$0xff] %v224
    // Predicated region
    $region10: #{tpu_custom_call.1} parent=1 // pred_check
      _
    $region11: #{tpu_custom_call.1} parent=1 // pred_check_branch
      %231 = sbr.rel (0) target = $region13
    $region12: #{tpu_custom_call.1} parent=1 // pred_region
      %s233 = ssub.s32 512, 512
      %234 = vsyncadd [#allocation3], %s233
      %s235 = sshll.u32 [#allocation2], 4
      %s236 = int_to_ptr.vmem [resolvable:$true] %s235
      %241 = dma.vmem_to_hbm [thread:$0]  %s236, 512, %s2, [#allocation3], 256, 256, 16
    $region13: #{tpu_custom_call.1} parent=1 // pred_fallthru
      _
    // Predicated region
    $region14: #{tpu_custom_call.1} parent=1 // pred_check
      _
    $region15: #{tpu_custom_call.1} parent=1 // pred_check_branch
      %243 = sbr.rel (0) target = $region17
    $region16: #{tpu_custom_call.1} parent=1 // pred_region
      %244 = dma.done [#allocation3], 512
    $region17: #{tpu_custom_call.1} parent=1 // pred_fallthru
      _
    %245 = vsyncpa [#allocation3], 1

</llo_original>
